<compile_context>
chip_gen: v7x
topology: tpu7x:2x2x1
jax: 0.10.0
libtpu: 0.0.40
codegen_flags: <defaults>
</compile_context>

<pallas_src>
import jax
import jax.numpy as jnp
from jax import lax
from jax.experimental import pallas as pl
from jax.experimental.pallas import tpu as pltpu


def _round_up(a: int, m: int) -> int:
    return ((a + m - 1) // m) * m


def _mib(n: int) -> int:
    return n * 1024 * 1024


# ---------------------------------------------------------------------------
# Shared in-kernel helpers
# ---------------------------------------------------------------------------
def _split_bf16(x):
    """x (f32) -> (hi, lo) bf16 with hi + lo ~= x to ~16 mantissa bits."""
    hi = x.astype(jnp.bfloat16)
    lo = (x - hi.astype(jnp.float32)).astype(jnp.bfloat16)
    return hi, lo


def _gram_from_split(hi, lo):
    """~ x @ x.T in f32 from the bf16 split: three bf16 MXU matmuls.

    Both operands contract on their lane (N) axis (transposed-RHS MXU matmul,
    no materialized transpose of the (C, tn) tile).  f32 matmuls are
    multi-pass on the MXU on v5e/v6e/v7x; this compensated bf16 form keeps
    near-f32 accuracy for the softmax exponents at the bf16 MXU rate.
    """
    dims = (((1,), (1,)), ((), ()))
    g = lax.dot_general(hi, hi, dims, preferred_element_type=jnp.float32)
    g = g + lax.dot_general(hi, lo, dims, preferred_element_type=jnp.float32)
    g = g + lax.dot_general(lo, hi, dims, preferred_element_type=jnp.float32)
    return g


def _softmax_from_gram(e):
    """softmax(rowmax(E) - E) == exp(rowmin(E) - E) / rowsum(exp(rowmin(E)-E)).

    One XLU row reduction for the shift; exact divide (once per batch, so the
    cost is negligible and the normalization stays bit-accurate).
    """
    e_min = jnp.min(e, axis=-1, keepdims=True)
    p = jnp.exp(e_min - e)
    return p / jnp.sum(p, axis=-1, keepdims=True)


# ---------------------------------------------------------------------------
# Fused single-kernel fast path: Gram + softmax + apply + residual per batch
# ---------------------------------------------------------------------------
def cam_fused_kernel(gamma_ref, x_ref, o_ref):
    gamma = gamma_ref[0]                      # scalar from SMEM
    x = x_ref[0]                              # (C, N_pad) f32
    hi, lo = _split_bf16(x)
    attn = _softmax_from_gram(_gram_from_split(hi, lo)).astype(jnp.bfloat16)
    out = jnp.dot(attn, hi, preferred_element_type=jnp.float32)
    o_ref[0] = (x + gamma * out).astype(o_ref.dtype)


# ---------------------------------------------------------------------------
# Pass 1a (B >= 2): Gram accumulated in f32 scratch, softmaxed attn out (bf16)
# ---------------------------------------------------------------------------
def cam_gram_softmax_kernel(x_ref, attn_ref, acc_ref):
    # x_ref:    (1, C, tn) f32 tile of the flattened input
    # attn_ref: (1, C, C)  bf16, resident across the N-tile ("arbitrary") axis
    # acc_ref:  (C, C)     f32 VMEM scratch accumulator
    k = pl.program_id(1)

    @pl.when(k == 0)
    def _():
        acc_ref[...] = jnp.zeros_like(acc_ref)

    hi, lo = _split_bf16(x_ref[0])
    acc_ref[...] += _gram_from_split(hi, lo)

    @pl.when(k == pl.num_programs(1) - 1)
    def _():
        attn_ref[0] = _softmax_from_gram(acc_ref[...]).astype(attn_ref.dtype)


# ---------------------------------------------------------------------------
# Pass 1b (B == 1): partial Grams, reduction split across a parallel axis
# ---------------------------------------------------------------------------
def cam_gram_partial_kernel(x_ref, gram_ref):
    # x_ref:    (1, C, tn) f32 tile
    # gram_ref: (1, C, C)  f32, resident across the N-tile ("arbitrary") axis
    k = pl.program_id(1)

    @pl.when(k == 0)
    def _():
        gram_ref[...] = jnp.zeros_like(gram_ref)

    hi, lo = _split_bf16(x_ref[0])
    gram_ref[0] += _gram_from_split(hi, lo)


# ---------------------------------------------------------------------------
# Pass 2: out = x + gamma * (attn @ x), tiled over N (fully parallel)
# ---------------------------------------------------------------------------
def cam_apply_kernel(gamma_ref, attn_ref, x_ref, o_ref):
    gamma = gamma_ref[0]                      # scalar from SMEM
    x = x_ref[0]                              # (C, tn) f32
    # attn_ref is already bf16 (cast once in Pass 1), so the resident block
    # needs no per-step VPU cast here.
    out = jnp.dot(attn_ref[0], x.astype(jnp.bfloat16),
                  preferred_element_type=jnp.float32)
    o_ref[0] = (x + gamma * out).astype(o_ref.dtype)


def cam_module_forward(x, gamma, *, tile_n=None, force_two_pass=False):
    """x: (B, C, H, W) float32, gamma: (1,) float32 -> (B, C, H, W)."""
    B, C, H, W = x.shape
    N = H * W
    x3 = x.reshape(B, C, N)
    gram_bytes = C * C * 4

    # ---------------- Fused fast path ----------------
    # Gate against a conservative VMEM estimate (double-buffered in/out slabs
    # + bf16 split + matmul temporaries), sized for v7x's 64 MiB physical VMEM.
    n_pad_f = _round_up(N, 128)
    slab_bytes = C * n_pad_f * 4
    fused_need = 8 * slab_bytes + 8 * gram_bytes + _mib(1)
    if not force_two_pass and fused_need <= _mib(36):
        xs = x3 if n_pad_f == N else jnp.pad(
            x3, ((0, 0), (0, 0), (0, n_pad_f - N)))
        out3 = pl.pallas_call(
            cam_fused_kernel,
            out_shape=jax.ShapeDtypeStruct((B, C, n_pad_f), x.dtype),
            grid=(B,),
            in_specs=[
                pl.BlockSpec(memory_space=pltpu.MemorySpace.SMEM),      # gamma
                pl.BlockSpec((1, C, n_pad_f), lambda b: (b, 0, 0)),     # x slab
            ],
            out_specs=pl.BlockSpec((1, C, n_pad_f), lambda b: (b, 0, 0)),
            compiler_params=pltpu.CompilerParams(
                dimension_semantics=("parallel",),
                vmem_limit_bytes=_mib(40)),
        )(gamma, xs)
        return out3[:, :, :N].reshape(B, C, H, W)

    # ---------------- Two-pass path ----------------
    # C-aware lane-dense N tile: target ~2 MiB per (C, tn) f32 tile so both
    # passes are HBM-roofline bound, not per-grid-step-overhead bound.
    if tile_n is None:
        tile_n = min(max(_round_up((2 ** 21) // (4 * C), 128), 512), 8192)
    tn = min(_round_up(tile_n, 128), _round_up(N, 128))

    # For B == 1 split the Pass-1 reduction in two parallel halves so both
    # v7x TensorCores work; harmless on single-core v5e/v6e.
    n_split = 2 if (B == 1 and _round_up(N, tn) // tn >= 2) else 1
    n_pad = _round_up(N, n_split * tn)
    k_tiles = n_pad // tn
    k_per = k_tiles // n_split

    # Zero padding of N is exact: zero columns change neither the Gram matrix,
    # nor the softmax, nor the valid output columns.
    if n_pad != N:
        x3 = jnp.pad(x3, ((0, 0), (0, 0), (0, n_pad - N)))

    # Explicit scoped-VMEM limit: v5e's default is only 16 MiB; cap well under
    # v7x's 64 MiB physical VMEM.
    tile_bytes = C * tn * 4
    vmem_limit = int(min(max(10 * tile_bytes + 8 * gram_bytes + _mib(2),
                             _mib(16)), _mib(48)))

    if n_split == 1:
        attn = pl.pallas_call(
            cam_gram_softmax_kernel,
            out_shape=jax.ShapeDtypeStruct((B, C, C), jnp.bfloat16),
            grid=(B, k_tiles),
            in_specs=[pl.BlockSpec((1, C, tn), lambda b, k: (b, 0, k))],
            out_specs=pl.BlockSpec((1, C, C), lambda b, k: (b, 0, 0)),
            scratch_shapes=[pltpu.VMEM((C, C), jnp.float32)],
            compiler_params=pltpu.CompilerParams(
                dimension_semantics=("parallel", "arbitrary"),
                vmem_limit_bytes=vmem_limit),
        )(x3)
    else:
        # Two partial Grams (one per half of N) on a parallel grid axis; the
        # (1, C, C) combine + softmax is a negligible wrapper-side epilogue.
        partial = pl.pallas_call(
            cam_gram_partial_kernel,
            out_shape=jax.ShapeDtypeStruct((B * n_split, C, C), jnp.float32),
            grid=(B * n_split, k_per),
            in_specs=[pl.BlockSpec(
                (1, C, tn),
                lambda s, k: (s // n_split, 0, (s % n_split) * k_per + k))],
            out_specs=pl.BlockSpec((1, C, C), lambda s, k: (s, 0, 0)),
            compiler_params=pltpu.CompilerParams(
                dimension_semantics=("parallel", "arbitrary"),
                vmem_limit_bytes=vmem_limit),
        )(x3)
        e = jnp.sum(partial.reshape(B, n_split, C, C), axis=1)
        e_min = jnp.min(e, axis=-1, keepdims=True)
        p = jnp.exp(e_min - e)
        attn = (p / jnp.sum(p, axis=-1, keepdims=True)).astype(jnp.bfloat16)

    # Pass 2: every (b, k) output tile is independent -> both axes "parallel".
    out3 = pl.pallas_call(
        cam_apply_kernel,
        out_shape=jax.ShapeDtypeStruct((B, C, n_pad), x.dtype),
        grid=(B, k_tiles),
        in_specs=[
            pl.BlockSpec(memory_space=pltpu.MemorySpace.SMEM),      # gamma
            pl.BlockSpec((1, C, C), lambda b, k: (b, 0, 0)),        # attn (bf16)
            pl.BlockSpec((1, C, tn), lambda b, k: (b, 0, k)),       # x tile
        ],
        out_specs=pl.BlockSpec((1, C, tn), lambda b, k: (b, 0, k)),
        compiler_params=pltpu.CompilerParams(
            dimension_semantics=("parallel", "parallel"),
            vmem_limit_bytes=vmem_limit),
    )(gamma, attn, x3)

    return out3[:, :, :N].reshape(B, C, H, W)


def cam_module_reference(x, gamma):
    """Pure-JAX reference replicating the PyTorch forward exactly."""
    B, C, H, W = x.shape
    q = x.reshape(B, C, H * W)
    energy = jnp.einsum('bcn,bdn->bcd', q, q)
    energy_new = jnp.max(energy, axis=-1, keepdims=True) - energy
    attention = jax.nn.softmax(energy_new, axis=-1)
    out = jnp.einsum('bcd,bdn->bcn', attention, q).reshape(B, C, H, W)
    return x + gamma[0] * out


if __name__ == "__main__":
    key = jax.random.PRNGKey(0)
    B, C, H, W = 2, 4, 16, 16
    x = jax.random.normal(key, (B, C, H, W), dtype=jnp.float32)

    gamma0 = jnp.zeros((1,), dtype=jnp.float32)   # module init: gamma = 0
    gamma = jnp.array([0.5], dtype=jnp.float32)   # exercises the attention path

    # Fused fast path. gamma == 0 -> output must equal x exactly.
    y0 = jax.block_until_ready(cam_module_forward(x, gamma0))
    assert jnp.allclose(y0, cam_module_reference(x, gamma0), atol=1e-6, rtol=1e-6)

    # Fused path, non-zero gamma (bf16 MXU apply matmul -> looser tolerance).
    y1 = jax.block_until_ready(cam_module_forward(x, gamma))
    assert jnp.allclose(y1, cam_module_reference(x, gamma), atol=2e-2, rtol=2e-2)

    # Two-pass path, B >= 2: in-kernel Gram scratch + softmax epilogue (bf16 attn).
    y2 = jax.block_until_ready(cam_module_forward(x, gamma, force_two_pass=True))
    assert jnp.allclose(y2, cam_module_reference(x, gamma), atol=2e-2, rtol=2e-2)

    # Two-pass path, B == 1, multiple N tiles -> core-split partial Grams,
    # plus non-multiple-of-128 spatial size to exercise the zero padding.
    x1 = jax.random.normal(jax.random.PRNGKey(0), (1, 4, 20, 20),
                           dtype=jnp.float32)
    y3 = jax.block_until_ready(
        cam_module_forward(x1, gamma, tile_n=128, force_two_pass=True))
    assert jnp.allclose(y3, cam_module_reference(x1, gamma), atol=2e-2, rtol=2e-2)

    print("KERNEL_OK")
</pallas_src>

<mosaic_0001>
module attributes {stable_mosaic.version = 11 : i64} {
  func.func @cam_fused_kernel(%arg0: i32, %arg1: memref<1xf32, #tpu.memory_space<smem>>, %arg2: memref<1x4x256xf32, #tpu.memory_space<vmem>>, %arg3: memref<1x4x256xf32, #tpu.memory_space<vmem>>) attributes {dimension_semantics = [#tpu.dimension_semantics<parallel>], iteration_bounds = array<i64: 2>, scalar_prefetch = 0 : i64, scratch_operands = 0 : i64, tpu.core_type = #tpu.core_type<tc>, window_params = [{transform_indices = @transform_0, window_bounds = array<i64: 1>}, {transform_indices = @transform_1, window_bounds = array<i64: 1, 4, 256>}, {transform_indices = @transform_2, window_bounds = array<i64: 1, 4, 256>}]} {
    %c0 = arith.constant 0 : index
    %0 = memref.load %arg1[%c0] : memref<1xf32, #tpu.memory_space<smem>>
    %c0_0 = arith.constant 0 : index
    %c0_1 = arith.constant 0 : index
    %c0_2 = arith.constant 0 : index
    %1 = vector.load %arg2[%c0_0, %c0_1, %c0_2] : memref<1x4x256xf32, #tpu.memory_space<vmem>>, vector<1x4x256xf32>
    %2 = vector.shape_cast %1 : vector<1x4x256xf32> to vector<4x256xf32>
    %3 = arith.truncf %2 : vector<4x256xf32> to vector<4x256xbf16>
    %4 = arith.extf %3 : vector<4x256xbf16> to vector<4x256xf32>
    %5 = arith.subf %2, %4 : vector<4x256xf32>
    %6 = arith.truncf %5 : vector<4x256xf32> to vector<4x256xbf16>
    %cst = arith.constant dense<0.000000e+00> : vector<4x4xf32>
    %7 = tpu.matmul %3, %3, %cst {dimension_numbers = #tpu.dot_dimension_numbers<[1], [1], [0], [0], [0, 0, 1, 0], [], []>} : vector<4x256xbf16>, vector<4x256xbf16>, vector<4x4xf32> -> vector<4x4xf32>
    %cst_3 = arith.constant dense<0.000000e+00> : vector<4x4xf32>
    %8 = tpu.matmul %3, %6, %cst_3 {dimension_numbers = #tpu.dot_dimension_numbers<[1], [1], [0], [0], [0, 0, 1, 0], [], []>} : vector<4x256xbf16>, vector<4x256xbf16>, vector<4x4xf32> -> vector<4x4xf32>
    %9 = arith.addf %7, %8 : vector<4x4xf32>
    %cst_4 = arith.constant dense<0.000000e+00> : vector<4x4xf32>
    %10 = tpu.matmul %6, %3, %cst_4 {dimension_numbers = #tpu.dot_dimension_numbers<[1], [1], [0], [0], [0, 0, 1, 0], [], []>} : vector<4x256xbf16>, vector<4x256xbf16>, vector<4x4xf32> -> vector<4x4xf32>
    %11 = arith.addf %9, %10 : vector<4x4xf32>
    %cst_5 = arith.constant dense<0x7F800000> : vector<4xf32>
    %12 = vector.multi_reduction <minimumf>, %11, %cst_5 [1] : vector<4x4xf32> to vector<4xf32>
    %13 = vector.shape_cast %12 : vector<4xf32> to vector<4x1xf32>
    %14 = vector.broadcast %13 : vector<4x1xf32> to vector<4x4xf32>
    %15 = arith.subf %14, %11 : vector<4x4xf32>
    %16 = math.exp %15 : vector<4x4xf32>
    %cst_6 = arith.constant dense<0.000000e+00> : vector<4xf32>
    %17 = vector.multi_reduction <add>, %16, %cst_6 [1] : vector<4x4xf32> to vector<4xf32>
    %18 = vector.shape_cast %17 : vector<4xf32> to vector<4x1xf32>
    %19 = vector.broadcast %18 : vector<4x1xf32> to vector<4x4xf32>
    %20 = arith.divf %16, %19 : vector<4x4xf32>
    %21 = arith.truncf %20 : vector<4x4xf32> to vector<4x4xbf16>
    %cst_7 = arith.constant dense<0.000000e+00> : vector<4x256xf32>
    %22 = tpu.matmul %21, %3, %cst_7 {dimension_numbers = #tpu.dot_dimension_numbers<[1], [0], [0], [1], [0, 0, 1, 1], [], []>} : vector<4x4xbf16>, vector<4x256xbf16>, vector<4x256xf32> -> vector<4x256xf32>
    %23 = vector.broadcast %0 : f32 to vector<4x256xf32>
    %24 = arith.mulf %23, %22 : vector<4x256xf32>
    %25 = arith.addf %2, %24 : vector<4x256xf32>
    %c0_8 = arith.constant 0 : index
    %c0_9 = arith.constant 0 : index
    %c0_10 = arith.constant 0 : index
    %26 = vector.load %arg3[%c0_8, %c0_9, %c0_10] : memref<1x4x256xf32, #tpu.memory_space<vmem>>, vector<1x4x256xf32>
    %27 = vector.shape_cast %26 : vector<1x4x256xf32> to vector<4x256xf32>
    %28 = vector.shape_cast %25 : vector<4x256xf32> to vector<1x4x256xf32>
    tpu.vector_store %arg3[%c0_8, %c0_9, %c0_10], %28 {strides = array<i32>} : memref<1x4x256xf32, #tpu.memory_space<vmem>>, vector<1x4x256xf32>,
    return
  }
  func.func @transform_0(%arg0: i32) -> i32 {
    %c0_i32 = arith.constant 0 : i32
    %c0_i32_0 = arith.constant 0 : i32
    return %c0_i32 : i32
  }
  func.func @transform_1(%arg0: i32) -> (i32, i32, i32) {
    %c0_i32 = arith.constant 0 : i32
    %c0_i32_0 = arith.constant 0 : i32
    %c0_i32_1 = arith.constant 0 : i32
    return %arg0, %c0_i32, %c0_i32_0 : i32, i32, i32
  }
  func.func @transform_2(%arg0: i32) -> (i32, i32, i32) {
    %c0_i32 = arith.constant 0 : i32
    %c0_i32_0 = arith.constant 0 : i32
    %c0_i32_1 = arith.constant 0 : i32
    return %arg0, %c0_i32, %c0_i32_0 : i32, i32, i32
  }
}

</mosaic_0001>

<llo_original>
// kernel: tpu_custom_call.1
$region0: #{tpu_custom_call.1}
  #allocation0 [shape = 'u32[]', space=smem, size = 0x4, offset = 0x4, fixed_abs, tag = 'smem constant byte address 0x4 - core index']
  #allocation1 [shape = 'u32[144,128]{1,0:T(1,128)}', space=vmem, size = 0x12000, scoped, tag = 'internal scratch']
  #allocation2 [shape = 'f32[1]{0:T(128)S(6)}', space=smem, size = 0x200, scoped, tag = 'scoped memory for tpu_custom_call.1']
  %s0 = inlined_call_operand.<no memory space> [shape: f32[1], index: 0, kind: input, shape index: {}]
  %s1 = inlined_call_operand.hbm [shape: f32[2,4,256], index: 1, kind: input, shape index: {}]
  %s2 = inlined_call_operand.hbm [shape: f32[2,4,256], index: 2, kind: output, shape index: {}]
  %s3 = sld [smem:[#allocation0]]
  $region45: #{tpu_custom_call.1} parent=0
    _
  %s5 = ssub.s32 1, %s3
  %s6 = scalar_select 0, %s5, %s3
  %7 = sst [smem:[#allocation2]] %s0
  $region1: #{tpu_custom_call.1} parent=0
    #allocation3 [shape = 'u8[8192]{0}', space=vmem, size = 0x2000, scoped, tag = 'input window, operand 1']
    #allocation4 [shape = 's32[2]{0}', space=sflag, size = 0x8, scoped, tag = 'scoped memory for tpu_custom_call.1']
    #allocation5 [shape = 's32[2]{0}', space=sflag, size = 0x8, scoped, tag = 'scoped memory for tpu_custom_call.1']
    #allocation6 [shape = 'u8[8192]{0}', space=vmem, size = 0x2000, scoped, tag = 'output window, operand 0']
    %8 = vsyncpa [#allocation4], 0
    %s9 = scalar_lea.sflag [#allocation4], 1
    %10 = vsyncpa %s9, 0
    %11 = vsyncpa [#allocation5], 0
    %s12 = scalar_lea.sflag [#allocation5], 1
    %13 = vsyncpa %s12, 0
    loop: start=0, step=1, limit=4
    $region2: #{tpu_custom_call.1} parent=1 // loop_pre_header
      _
    $region3: #{tpu_custom_call.1} parent=1 // loop_header
      %s15 = sphi 0, %s19
      %p16 = scmp.ge.s32.totalorder %s15, 4
      %s23 = sphi 0, %s23
      %s25 = sphi 0, %s23
      %s26 = sphi 0, %s25
      %s40 = sphi 0, %s26
      %s46 = sphi 0, %s48
      %s49 = sphi 0, %s46
      %s50 = sphi 0, %s49
      %s66 = sphi 0, %s50
      %s72 = sphi 0, %s74
      %s75 = sphi 0, %s72
      %s76 = sphi 0, %s75
      %s92 = sphi 0, %s76
    $region4: #{tpu_custom_call.1} parent=1 // loop_header_branch
      %18 = sbr.rel (%p16) target = $region8
    $region5: #{tpu_custom_call.1} parent=1 // loop_body
      %s20 = ssub.s32 %s15, 1
      %s21 = ssub.s32 %s15, 2
      %s22 = sadd.s32 %s15, 1
      %s24 = sadd.s32 %s23, 1
      %p27 = scmp.eq.s32.totalorder %s15, 1
      %p28 = scmp.ne.s32.totalorder %s23, %s25
      %p29 = scmp.eq.s32.totalorder %s15, 0
      %p30 = por %p28, %p29
      %p31 = scmp.ne.s32.totalorder %s23, %s25
      %p32 = scmp.eq.s32.totalorder %s20, 1
      %p33 = por %p31, %p32
      %p34 = scmp.ne.s32.totalorder %s25, %s26
      %p35 = scmp.eq.s32.totalorder %s20, 0
      %p36 = por %p34, %p35
      %p37 = scmp.ne.s32.totalorder %s25, %s26
      %p38 = scmp.eq.s32.totalorder %s21, 1
      %p39 = por %p37, %p38
      %p41 = scmp.ne.s32.totalorder %s26, %s40
      %p42 = scmp.eq.s32.totalorder %s21, 0
      %p43 = por %p41, %p42
      %s44 = ssub.s32 %s15, %s22
      %p45 = scmp.eq.s32.totalorder %s44, 0
      %s47 = sadd.s32 %s46, 1
      %s48 = scalar_select %p45, %s46, %s47
      %p51 = pneg %p45
      %p52 = scmp.eq.s32.totalorder %s15, 1
      %p53 = por %p51, %p52
      %p54 = scmp.ne.s32.totalorder %s46, %s49
      %p55 = scmp.eq.s32.totalorder %s15, 0
      %p56 = por %p54, %p55
      %p57 = scmp.ne.s32.totalorder %s46, %s49
      %p58 = scmp.eq.s32.totalorder %s20, 1
      %p59 = por %p57, %p58
      %p60 = scmp.ne.s32.totalorder %s49, %s50
      %p61 = scmp.eq.s32.totalorder %s20, 0
      %p62 = por %p60, %p61
      %p63 = scmp.ne.s32.totalorder %s49, %s50
      %p64 = scmp.eq.s32.totalorder %s21, 1
      %p65 = por %p63, %p64
      %p67 = scmp.ne.s32.totalorder %s50, %s66
      %p68 = scmp.eq.s32.totalorder %s21, 0
      %p69 = por %p67, %p68
      %s70 = ssub.s32 %s15, %s22
      %p71 = scmp.eq.s32.totalorder %s70, 0
      %s73 = sadd.s32 %s72, 1
      %s74 = scalar_select %p71, %s72, %s73
      %p77 = pneg %p71
      %p78 = scmp.eq.s32.totalorder %s15, 1
      %p79 = por %p77, %p78
      %p80 = scmp.ne.s32.totalorder %s72, %s75
      %p81 = scmp.eq.s32.totalorder %s15, 0
      %p82 = por %p80, %p81
      %p83 = scmp.ne.s32.totalorder %s72, %s75
      %p84 = scmp.eq.s32.totalorder %s20, 1
      %p85 = por %p83, %p84
      %p86 = scmp.ne.s32.totalorder %s75, %s76
      %p87 = scmp.eq.s32.totalorder %s20, 0
      %p88 = por %p86, %p87
      %p89 = scmp.ne.s32.totalorder %s75, %s76
      %p90 = scmp.eq.s32.totalorder %s21, 1
      %p91 = por %p89, %p90
      %p93 = scmp.ne.s32.totalorder %s76, %s92
      %p94 = scmp.eq.s32.totalorder %s21, 0
      %p95 = por %p93, %p94
      %p96 = scmp.le.s32.totalorder 1, %s15
      %p97 = scmp.lt.s32.totalorder %s15, 3
      %p98 = pnand %p96, %p97
      %p99 = pneg %p98
      // Predicated region
      $region9: #{tpu_custom_call.1} parent=5 // pred_check
        _
      $region10: #{tpu_custom_call.1} parent=5 // pred_check_branch
        %101 = sbr.rel (%p98) target = $region12
      $region11: #{tpu_custom_call.1} parent=5 // pred_region
        %s102 = ssub.s32 %s15, 1
        // Predicated region
        $region13: #{tpu_custom_call.1} parent=11 // pred_check
          %p103 = pneg %p36
        $region14: #{tpu_custom_call.1} parent=11 // pred_check_branch
          %105 = sbr.rel (%p103) target = $region16
        $region15: #{tpu_custom_call.1} parent=11 // pred_region
          _
        $region16: #{tpu_custom_call.1} parent=11 // pred_fallthru
          _
      $region12: #{tpu_custom_call.1} parent=5 // pred_fallthru
        _
      %p106 = scmp.lt.s32.totalorder %s15, 2
      // Predicated region
      $region17: #{tpu_custom_call.1} parent=5 // pred_check
        %p107 = pneg %p106
      $region18: #{tpu_custom_call.1} parent=5 // pred_check_branch
        %109 = sbr.rel (%p107) target = $region20
      $region19: #{tpu_custom_call.1} parent=5 // pred_region
        // Predicated region
        $region21: #{tpu_custom_call.1} parent=19 // pred_check
          %p110 = pneg %p56
        $region22: #{tpu_custom_call.1} parent=19 // pred_check_branch
          %112 = sbr.rel (%p110) target = $region24
        $region23: #{tpu_custom_call.1} parent=19 // pred_region
          %s113 = sand.u32 %s46, 1
          %s114 = scalar_lea.sflag [#allocation4], %s113
          %s115 = sand.u32 %s46, 1
          %s116 = smul.addr %s115, 8
          %s117 = scalar_lea.vmem [#allocation3], %s116
          %s119 = ssub.s32 128, 128
          %120 = vsyncadd %s114, %s119
          %s121 = smul.addr %s15, 2
          %s122 = smul.addr %s121, 64
          %s123 = scalar_lea.hbm %s1, %s122
          %s125 = sshll.u32 %s117, 4
          %s126 = int_to_ptr.vmem [resolvable:$true] %s125
          %128 = dma.hbm_to_vmem [thread:$0]  %s123, 128, %s126, %s114
        $region24: #{tpu_custom_call.1} parent=19 // pred_fallthru
          _
      $region20: #{tpu_custom_call.1} parent=5 // pred_fallthru
        _
      %p129 = scmp.le.s32.totalorder 1, %s15
      %p130 = scmp.lt.s32.totalorder %s15, 3
      %p131 = pnand %p129, %p130
      %p132 = pneg %p131
      // Predicated region
      $region25: #{tpu_custom_call.1} parent=5 // pred_check
        _
      $region26: #{tpu_custom_call.1} parent=5 // pred_check_branch
        %134 = sbr.rel (%p131) target = $region28
      $region27: #{tpu_custom_call.1} parent=5 // pred_region
        %s135 = ssub.s32 %s15, 1
        %s136 = sand.u32 %s49, 1
        %s137 = scalar_lea.sflag [#allocation4], %s136
        %s138 = sand.u32 %s49, 1
        %s139 = smul.addr %s138, 8
        %s140 = scalar_lea.vmem [#allocation3], %s139
        // Predicated region
        $region29: #{tpu_custom_call.1} parent=27 // pred_check
          %p141 = pneg %p62
        $region30: #{tpu_custom_call.1} parent=27 // pred_check_branch
          %143 = sbr.rel (%p141) target = $region32
        $region31: #{tpu_custom_call.1} parent=27 // pred_region
          %144 = dma.done %s137, 128
        $region32: #{tpu_custom_call.1} parent=27 // pred_fallthru
          _
        %p145 = pneg %p36
        %p146 = pneg %p33
        %s147 = sand.u32 %s49, 1
        %s148 = scalar_lea.sflag [#allocation4], %s147
        %s149 = sand.u32 %s49, 1
        %s150 = smul.addr %s149, 8
        %s151 = scalar_lea.vmem [#allocation3], %s150
        %p152 = pneg %p62
        %p153 = pneg %p59
        %p154 = pneg %p88
        %p155 = pneg %p85
        %s156 = sand.u32 %s75, 1
        %s157 = scalar_lea.sflag [#allocation5], %s156
        %s158 = sand.u32 %s75, 1
        %s159 = smul.addr %s158, 8
        %s160 = scalar_lea.vmem [#allocation6], %s159
        %s162 = sld [smem:[#allocation2]]
        %v163 = vld [vmem:[%s140] sm:$0xff]
        %v165 = vcombine.high %v163, %v163
        %v167 = vpack.c.bf16 %v163, %v163
        %v168 = vpack.c.bf16 %v165, %v165
        %v169 = vunpack.c.l.bf16 %v167
        %v170 = vunpack.c.l.bf16 %v168
        %v173 = vcombine.low %v169, %v170
        %v175 = vsub.f32 %v163, %v173
        %v177 = vcombine.high %v175, %v175
        %v179 = vpack.c.bf16 %v175, %v175
        %v180 = vpack.c.bf16 %v177, %v177
        %181 = vmatprep.subr.bf16.mxu0 %v180
        %182 = vmatpush1.bf16.xpose.msra.mxu0 %v179
        %183 = vmatprep.subr.bf16.mxu0 0
        %184 = vmatpush1.bf16.xpose.msra.mxu0 0
        %185 = vmatprep.subr.bf16.mxu0 0
        %186 = vmatpush1.bf16.xpose.msra.mxu0 0
        %187 = vmatprep.subr.bf16.mxu0 0
        %188 = vmatpush1.bf16.xpose.msra.mxu0 0
        %189 = vmatprep.subr.bf16.mxu0 0
        %190 = vmatpush1.bf16.xpose.msra.mxu0 0
        %191 = vmatprep.subr.bf16.mxu0 0
        %192 = vmatpush1.bf16.xpose.msra.mxu0 0
        %193 = vmatprep.subr.bf16.mxu0 0
        %194 = vmatpush1.bf16.xpose.msra.mxu0 0
        %195 = vmatprep.subr.bf16.mxu0 0
        %196 = vmatpush1.bf16.xpose.msra.mxu0 0
        %197 = vmatprep.subr.bf16.mxu0 0
        %198 = vmatpush1.bf16.xpose.msra.mxu0 0
        %199 = vmatprep.subr.bf16.mxu0 0
        %200 = vmatpush1.bf16.xpose.msra.mxu0 0
        %201 = vmatprep.subr.bf16.mxu0 0
        %202 = vmatpush1.bf16.xpose.msra.mxu0 0
        %203 = vmatprep.subr.bf16.mxu0 0
        %204 = vmatpush1.bf16.xpose.msra.mxu0 0
        %205 = vmatprep.subr.bf16.mxu0 0
        %206 = vmatpush1.bf16.xpose.msra.mxu0 0
        %207 = vmatprep.subr.bf16.mxu0 0
        %208 = vmatpush1.bf16.xpose.msra.mxu0 0
        %209 = vmatprep.subr.bf16.mxu0 0
        %210 = vmatpush1.bf16.xpose.msra.mxu0 0
        %211 = vmatprep.subr.bf16.mxu0 0
        %212 = vmatpush1.bf16.xpose.msra.mxu0 0
        %213 = vmatprep.mubr.bf16.mxu0 %v168
        %214 = vmatmul.mubr.bf16.gmra.mrb[0].mxu0 %v167
        %v215 = vpop.f32.mrb[0].mxu0
        %v216 = vadd.f32 0.0, %v215
        %v217 = vpop.f32.mrb[0].mxu0
        %v218 = vpop.f32.mrb[0].mxu0
        %v219 = vpop.f32.mrb[0].mxu0
        %220 = vdwg.mxu0
        %221 = vmatprep.subr.bf16.mxu0 %v168
        %222 = vmatpush1.bf16.xpose.msra.mxu0 %v167
        %223 = vmatprep.subr.bf16.mxu0 0
        %224 = vmatpush1.bf16.xpose.msra.mxu0 0
        %225 = vmatprep.subr.bf16.mxu0 0
        %226 = vmatpush1.bf16.xpose.msra.mxu0 0
        %227 = vmatprep.subr.bf16.mxu0 0
        %228 = vmatpush1.bf16.xpose.msra.mxu0 0
        %229 = vmatprep.subr.bf16.mxu0 0
        %230 = vmatpush1.bf16.xpose.msra.mxu0 0
        %231 = vmatprep.subr.bf16.mxu0 0
        %232 = vmatpush1.bf16.xpose.msra.mxu0 0
        %233 = vmatprep.subr.bf16.mxu0 0
        %234 = vmatpush1.bf16.xpose.msra.mxu0 0
        %235 = vmatprep.subr.bf16.mxu0 0
        %236 = vmatpush1.bf16.xpose.msra.mxu0 0
        %237 = vmatprep.subr.bf16.mxu0 0
        %238 = vmatpush1.bf16.xpose.msra.mxu0 0
        %239 = vmatprep.subr.bf16.mxu0 0
        %240 = vmatpush1.bf16.xpose.msra.mxu0 0
        %241 = vmatprep.subr.bf16.mxu0 0
        %242 = vmatpush1.bf16.xpose.msra.mxu0 0
        %243 = vmatprep.subr.bf16.mxu0 0
        %244 = vmatpush1.bf16.xpose.msra.mxu0 0
        %245 = vmatprep.subr.bf16.mxu0 0
        %246 = vmatpush1.bf16.xpose.msra.mxu0 0
        %247 = vmatprep.subr.bf16.mxu0 0
        %248 = vmatpush1.bf16.xpose.msra.mxu0 0
        %249 = vmatprep.subr.bf16.mxu0 0
        %250 = vmatpush1.bf16.xpose.msra.mxu0 0
        %251 = vmatprep.subr.bf16.mxu0 0
        %252 = vmatpush1.bf16.xpose.msra.mxu0 0
        %253 = vmatprep.mubr.bf16.mxu0 %v168
        %254 = vmatmul.mubr.bf16.gmra.mrb[0].mxu0 %v167
        %v255 = vpop.f32.mrb[0].mxu0
        %v256 = vadd.f32 %v216, %v255
        %v257 = vpop.f32.mrb[0].mxu0
        %v258 = vpop.f32.mrb[0].mxu0
        %v259 = vpop.f32.mrb[0].mxu0
        %260 = vdwg.mxu0
        %261 = vmatprep.subr.bf16.mxu0 %v168
        %262 = vmatpush1.bf16.xpose.msra.mxu0 %v167
        %263 = vmatprep.subr.bf16.mxu0 0
        %264 = vmatpush1.bf16.xpose.msra.mxu0 0
        %265 = vmatprep.subr.bf16.mxu0 0
        %266 = vmatpush1.bf16.xpose.msra.mxu0 0
        %267 = vmatprep.subr.bf16.mxu0 0
        %268 = vmatpush1.bf16.xpose.msra.mxu0 0
        %269 = vmatprep.subr.bf16.mxu0 0
        %270 = vmatpush1.bf16.xpose.msra.mxu0 0
        %271 = vmatprep.subr.bf16.mxu0 0
        %272 = vmatpush1.bf16.xpose.msra.mxu0 0
        %273 = vmatprep.subr.bf16.mxu0 0
        %274 = vmatpush1.bf16.xpose.msra.mxu0 0
        %275 = vmatprep.subr.bf16.mxu0 0
        %276 = vmatpush1.bf16.xpose.msra.mxu0 0
        %277 = vmatprep.subr.bf16.mxu0 0
        %278 = vmatpush1.bf16.xpose.msra.mxu0 0
        %279 = vmatprep.subr.bf16.mxu0 0
        %280 = vmatpush1.bf16.xpose.msra.mxu0 0
        %281 = vmatprep.subr.bf16.mxu0 0
        %282 = vmatpush1.bf16.xpose.msra.mxu0 0
        %283 = vmatprep.subr.bf16.mxu0 0
        %284 = vmatpush1.bf16.xpose.msra.mxu0 0
        %285 = vmatprep.subr.bf16.mxu0 0
        %286 = vmatpush1.bf16.xpose.msra.mxu0 0
        %287 = vmatprep.subr.bf16.mxu0 0
        %288 = vmatpush1.bf16.xpose.msra.mxu0 0
        %289 = vmatprep.subr.bf16.mxu0 0
        %290 = vmatpush1.bf16.xpose.msra.mxu0 0
        %291 = vmatprep.subr.bf16.mxu0 0
        %292 = vmatpush1.bf16.xpose.msra.mxu0 0
        %293 = vmatprep.mubr.bf16.mxu0 %v180
        %294 = vmatmul.mubr.bf16.gmra.mrb[0].mxu0 %v179
        %v295 = vpop.f32.mrb[0].mxu0
        %v296 = vadd.f32 0.0, %v295
        %v297 = vpop.f32.mrb[0].mxu0
        %v298 = vpop.f32.mrb[0].mxu0
        %v299 = vpop.f32.mrb[0].mxu0
        %300 = vdwg.mxu0
        %v301 = vadd.f32 %v256, %v296
        %vm302 = vcmask 27648
        %v303 = vsel %vm302, %v301, inf
        %304 = vmin.xlane.f32.xlu0 %v303
        %v305 = vpop.xlane.xlu0 %304
        %v306 = vsub.f32 %v305, %v301
        %v307 = vmul.f32 %v306, 1.442695
        %v308 = vpow.pop %v307
        %v309 = vsel %vm302, %v308, 0.0
        %310 = vadd.xlane.f32.xlu0 %v309
        %v311 = vpop.xlane.xlu0 %310
        %v312 = vrcp.pop %v311
        %v313 = vmul.f32 %v308, %v312
        %v314 = vpack.c.bf16 %v313, %v313
        %vm315 = vcmask 31744
        %v317 = vsel %vm315, %v314, 0
        %vm319 = vcmask 1041408
        %v321 = vsel %vm319, %v167, 0
        %v324 = vsel %vm319, %v168, 0
        %326 = vmatprep.subr.bf16.mxu0 %v324
        %327 = vmatpush1.bf16.msra.mxu0 %v321
        %328 = vmatprep.subr.bf16.mxu0 0
        %329 = vmatpush1.bf16.msra.mxu0 0
        %330 = vmatprep.subr.bf16.mxu0 0
        %331 = vmatpush1.bf16.msra.mxu0 0
        %332 = vmatprep.subr.bf16.mxu0 0
        %333 = vmatpush1.bf16.msra.mxu0 0
        %334 = vmatprep.subr.bf16.mxu0 0
        %335 = vmatpush1.bf16.msra.mxu0 0
        %336 = vmatprep.subr.bf16.mxu0 0
        %337 = vmatpush1.bf16.msra.mxu0 0
        %338 = vmatprep.subr.bf16.mxu0 0
        %339 = vmatpush1.bf16.msra.mxu0 0
        %340 = vmatprep.subr.bf16.mxu0 0
        %341 = vmatpush1.bf16.msra.mxu0 0
        %342 = vmatprep.subr.bf16.mxu0 0
        %343 = vmatpush1.bf16.msra.mxu0 0
        %344 = vmatprep.subr.bf16.mxu0 0
        %345 = vmatpush1.bf16.msra.mxu0 0
        %346 = vmatprep.subr.bf16.mxu0 0
        %347 = vmatpush1.bf16.msra.mxu0 0
        %348 = vmatprep.subr.bf16.mxu0 0
        %349 = vmatpush1.bf16.msra.mxu0 0
        %350 = vmatprep.subr.bf16.mxu0 0
        %351 = vmatpush1.bf16.msra.mxu0 0
        %352 = vmatprep.subr.bf16.mxu0 0
        %353 = vmatpush1.bf16.msra.mxu0 0
        %354 = vmatprep.subr.bf16.mxu0 0
        %355 = vmatpush1.bf16.msra.mxu0 0
        %356 = vmatprep.subr.bf16.mxu0 0
        %357 = vmatpush1.bf16.msra.mxu0 0
        %358 = vmatprep.mubr.bf16.mxu0 0
        %359 = vmatmul.mubr.bf16.gmra.mrb[0].mxu0 %v317
        %v360 = vpop.f32.mrb[0].mxu0
        %v361 = vadd.f32 0.0, %v360
        %v362 = vpop.f32.mrb[0].mxu0
        %v363 = vadd.f32 0.0, %v362
        %v364 = vpop.f32.mrb[0].mxu0
        %v365 = vpop.f32.mrb[0].mxu0
        %366 = vdwg.mxu0
        %v367 = vstv %s162
        %v368 = vmul.f32 %v367, %v361
        %v369 = vmul.f32 %v367, %v363
        %v372 = vcombine.low %v368, %v369
        %v374 = vadd.f32 %v163, %v372
        %375 = vst [vmem:[%s160] sm:$0xff] %v374
        %s376 = sand.u32 %s75, 1
        %s377 = scalar_lea.sflag [#allocation5], %s376
        %s378 = sand.u32 %s75, 1
        %s379 = smul.addr %s378, 8
        %s380 = scalar_lea.vmem [#allocation6], %s379
        // Predicated region
        $region33: #{tpu_custom_call.1} parent=27 // pred_check
          %p381 = pneg %p85
        $region34: #{tpu_custom_call.1} parent=27 // pred_check_branch
          %383 = sbr.rel (%p381) target = $region36
        $region35: #{tpu_custom_call.1} parent=27 // pred_region
          %s385 = ssub.s32 128, 128
          %386 = vsyncadd %s377, %s385
          %s387 = smul.addr %s20, 2
          %s388 = smul.addr %s387, 64
          %s389 = scalar_lea.hbm %s2, %s388
          %s391 = sshll.u32 %s380, 4
          %s392 = int_to_ptr.vmem [resolvable:$true] %s391
          %394 = dma.vmem_to_hbm [thread:$0]  %s392, 128, %s389, %s377
        $region36: #{tpu_custom_call.1} parent=27 // pred_fallthru
          _
      $region28: #{tpu_custom_call.1} parent=5 // pred_fallthru
        _
      %p395 = scmp.le.s32.totalorder 2, %s15
      // Predicated region
      $region37: #{tpu_custom_call.1} parent=5 // pred_check
        %p396 = pneg %p395
      $region38: #{tpu_custom_call.1} parent=5 // pred_check_branch
        %398 = sbr.rel (%p396) target = $region40
      $region39: #{tpu_custom_call.1} parent=5 // pred_region
        %s399 = ssub.s32 %s15, 2
        // Predicated region
        $region41: #{tpu_custom_call.1} parent=39 // pred_check
          %p400 = pneg %p91
        $region42: #{tpu_custom_call.1} parent=39 // pred_check_branch
          %402 = sbr.rel (%p400) target = $region44
        $region43: #{tpu_custom_call.1} parent=39 // pred_region
          %s403 = sand.u32 %s76, 1
          %s404 = scalar_lea.sflag [#allocation5], %s403
          %s405 = sand.u32 %s76, 1
          %s406 = smul.addr %s405, 8
          %s407 = scalar_lea.vmem [#allocation6], %s406
          %408 = dma.done %s404, 128
        $region44: #{tpu_custom_call.1} parent=39 // pred_fallthru
          _
      $region40: #{tpu_custom_call.1} parent=5 // pred_fallthru
        _
    $region6: #{tpu_custom_call.1} parent=1 // loop_footer
      %s19 = sadd.s32 1, %s15
    $region7: #{tpu_custom_call.1} parent=1 // loop_footer_branch
      %14 = sbr.rel target = $region3
    $region8: #{tpu_custom_call.1} parent=1 // loop_exit
      _
    %409 = vsyncpa [#allocation4], 1
    %s410 = scalar_lea.sflag [#allocation4], 1
    %411 = vsyncpa %s410, 1
    %412 = vsyncpa [#allocation5], 1
    %s413 = scalar_lea.sflag [#allocation5], 1
    %414 = vsyncpa %s413, 1

</llo_original>
